<compile_context>
chip_gen: v6e
topology: v6e:2x2x1
jax: 0.10.0
libtpu: 0.0.40
codegen_flags: <defaults>
</compile_context>

<pallas_src>
import functools

import jax
import jax.numpy as jnp
from jax.experimental import pallas as pl
from jax.experimental.pallas import tpu as pltpu


def _linear_bias_kernel(x_ref, w_ref, b_ref, o_ref, acc_ref):
    # x_ref: (tm, tk), w_ref: (tk, tn), b_ref: (1, tn) f32,
    # o_ref: (tm, tn), acc_ref: (tm, tn) f32 scratch.
    k = pl.program_id(2)

    @pl.when(k == 0)
    def _():
        acc_ref[...] = jnp.zeros_like(acc_ref)

    acc_ref[...] += jnp.dot(
        x_ref[...], w_ref[...], preferred_element_type=jnp.float32
    )

    @pl.when(k == pl.num_programs(2) - 1)
    def _():
        o_ref[...] = (acc_ref[...] + b_ref[...]).astype(o_ref.dtype)


def _linear_nobias_kernel(x_ref, w_ref, o_ref, acc_ref):
    k = pl.program_id(2)

    @pl.when(k == 0)
    def _():
        acc_ref[...] = jnp.zeros_like(acc_ref)

    acc_ref[...] += jnp.dot(
        x_ref[...], w_ref[...], preferred_element_type=jnp.float32
    )

    @pl.when(k == pl.num_programs(2) - 1)
    def _():
        o_ref[...] = acc_ref[...].astype(o_ref.dtype)


def _round_up(x, m):
    return ((x + m - 1) // m) * m


@functools.partial(jax.jit, static_argnames=("tm", "tn", "tk"))
def fast_linear(x, weight, bias=None, *, tm=512, tn=512, tk=1024):
    """Equivalent of torch.nn.functional.linear(x, weight, bias).

    x:      (..., K)
    weight: (N, K)   (PyTorch layout)
    bias:   (N,) or None
    returns (..., N)
    """
    *lead, K = x.shape
    N, Kw = weight.shape
    assert K == Kw, f"in_features mismatch: {K} vs {Kw}"

    x2d = x.reshape(-1, K)
    M = x2d.shape[0]

    # Clamp tile sizes to the (hardware-aligned) problem size, then pad up to
    # tile multiples.  f32 min tile is (8, 128) on the last two dims.
    tm = min(tm, _round_up(M, 8))
    tn = min(tn, _round_up(N, 128))
    tk = min(tk, _round_up(K, 128))

    Mp = _round_up(M, tm)
    Np = _round_up(N, tn)
    Kp = _round_up(K, tk)

    # Pad operands (zero padding along K is exact for the matmul).
    if (Mp, Kp) != (M, K):
        x2d = jnp.pad(x2d, ((0, Mp - M), (0, Kp - K)))
    # One-time layout plumbing: (N, K) -> (K, N) so the kernel needs no transpose.
    w_t = weight.T
    if (Kp, Np) != (K, N):
        w_t = jnp.pad(w_t, ((0, Kp - K), (0, Np - N)))

    grid = (Mp // tm, Np // tn, Kp // tk)
    out_shape = jax.ShapeDtypeStruct((Mp, Np), x.dtype)

    x_spec = pl.BlockSpec((tm, tk), lambda i, j, k: (i, k))
    w_spec = pl.BlockSpec((tk, tn), lambda i, j, k: (k, j))
    o_spec = pl.BlockSpec((tm, tn), lambda i, j, k: (i, j))

    itemsize = jnp.dtype(x.dtype).itemsize
    cost = pl.CostEstimate(
        flops=2 * Mp * Np * Kp,
        transcendentals=0,
        bytes_accessed=(Mp * Kp + Kp * Np + Mp * Np) * itemsize,
    )
    cp = pltpu.CompilerParams(
        dimension_semantics=("parallel", "parallel", "arbitrary"),
        vmem_limit_bytes=32 * 1024 * 1024,
    )
    scratch = [pltpu.VMEM((tm, tn), jnp.float32)]

    if bias is not None:
        b2d = bias.astype(jnp.float32).reshape(1, N)
        if Np != N:
            b2d = jnp.pad(b2d, ((0, 0), (0, Np - N)))
        b_spec = pl.BlockSpec((1, tn), lambda i, j, k: (0, j))
        out = pl.pallas_call(
            _linear_bias_kernel,
            out_shape=out_shape,
            grid_spec=pltpu.PrefetchScalarGridSpec(
                num_scalar_prefetch=0,
                grid=grid,
                in_specs=[x_spec, w_spec, b_spec],
                out_specs=o_spec,
                scratch_shapes=scratch,
            ),
            compiler_params=cp,
            cost_estimate=cost,
        )(x2d, w_t, b2d)
    else:
        out = pl.pallas_call(
            _linear_nobias_kernel,
            out_shape=out_shape,
            grid_spec=pltpu.PrefetchScalarGridSpec(
                num_scalar_prefetch=0,
                grid=grid,
                in_specs=[x_spec, w_spec],
                out_specs=o_spec,
                scratch_shapes=scratch,
            ),
            compiler_params=cp,
            cost_estimate=cost,
        )(x2d, w_t)

    return out[:M, :N].reshape(*lead, N)


if __name__ == "__main__":
    # Deterministic synthetic parameters (no checkpoint loading).
    key = jax.random.PRNGKey(0)
    k_x, k_w, k_b, k_x2, k_w2, k_b2 = jax.random.split(key, 6)

    # Case 1: aligned shapes, with and without bias.
    batch, seq, hidden, out_features = 2, 8, 128, 256
    x = jax.random.normal(k_x, (batch, seq, hidden), dtype=jnp.float32)
    weight = jax.random.normal(k_w, (out_features, hidden), dtype=jnp.float32) * 0.02
    bias = jax.random.normal(k_b, (out_features,), dtype=jnp.float32) * 0.1

    y = jax.block_until_ready(fast_linear(x, weight, bias))
    ref = x @ weight.T + bias
    assert y.shape == (batch, seq, out_features)
    assert jnp.allclose(y, ref, atol=1e-4, rtol=1e-4)

    y0 = jax.block_until_ready(fast_linear(x, weight, None))
    ref0 = x @ weight.T
    assert jnp.allclose(y0, ref0, atol=1e-4, rtol=1e-4)

    # Case 2: non-aligned shapes exercise the padding path.
    hidden2, out2 = 96, 200
    x2 = jax.random.normal(k_x2, (3, 5, hidden2), dtype=jnp.float32)
    w2 = jax.random.normal(k_w2, (out2, hidden2), dtype=jnp.float32) * 0.02
    b2 = jax.random.normal(k_b2, (out2,), dtype=jnp.float32) * 0.1

    y2 = jax.block_until_ready(fast_linear(x2, w2, b2))
    ref2 = x2 @ w2.T + b2
    assert y2.shape == (3, 5, out2)
    assert jnp.allclose(y2, ref2, atol=1e-4, rtol=1e-4)

    print("KERNEL_OK")
</pallas_src>

<mosaic_0001>
module attributes {stable_mosaic.version = 11 : i64} {
  func.func @_linear_bias_kernel(%arg0: i32, %arg1: i32, %arg2: i32, %arg3: memref<16x128xf32, #tpu.memory_space<vmem>>, %arg4: memref<128x256xf32, #tpu.memory_space<vmem>>, %arg5: memref<1x256xf32, #tpu.memory_space<vmem>>, %arg6: memref<16x256xf32, #tpu.memory_space<vmem>>, %arg7: memref<16x256xf32, #tpu.memory_space<vmem>>) attributes {dimension_semantics = [#tpu.dimension_semantics<parallel>, #tpu.dimension_semantics<parallel>, #tpu.dimension_semantics<arbitrary>], iteration_bounds = array<i64: 1, 1, 1>, scalar_prefetch = 0 : i64, scratch_operands = 1 : i64, tpu.core_type = #tpu.core_type<tc>, window_params = [{transform_indices = @transform_0, window_bounds = array<i64: 16, 128>}, {transform_indices = @transform_1, window_bounds = array<i64: 128, 256>}, {transform_indices = @transform_2, window_bounds = array<i64: 1, 256>}, {transform_indices = @transform_3, window_bounds = array<i64: 16, 256>}]} {
    %c0_i32 = arith.constant 0 : i32
    %0 = arith.cmpi eq, %arg2, %c0_i32 : i32
    %1 = arith.extui %0 : i1 to i32
    %c0_i32_0 = arith.constant 0 : i32
    %2 = arith.cmpi ne, %1, %c0_i32_0 : i32
    scf.if %2 {
      %cst_10 = arith.constant 0.000000e+00 : f32
      %12 = vector.broadcast %cst_10 : f32 to vector<16x256xf32>
      %c0_11 = arith.constant 0 : index
      %c0_12 = arith.constant 0 : index
      %13 = vector.load %arg7[%c0_11, %c0_12] : memref<16x256xf32, #tpu.memory_space<vmem>>, vector<16x256xf32>
      tpu.vector_store %arg7[%c0_11, %c0_12], %12 {strides = array<i32>} : memref<16x256xf32, #tpu.memory_space<vmem>>, vector<16x256xf32>,
    } else {
    }
    %c0 = arith.constant 0 : index
    %c0_1 = arith.constant 0 : index
    %3 = vector.load %arg7[%c0, %c0_1] : memref<16x256xf32, #tpu.memory_space<vmem>>, vector<16x256xf32>
    %c0_2 = arith.constant 0 : index
    %c0_3 = arith.constant 0 : index
    %4 = vector.load %arg3[%c0_2, %c0_3] : memref<16x128xf32, #tpu.memory_space<vmem>>, vector<16x128xf32>
    %c0_4 = arith.constant 0 : index
    %c0_5 = arith.constant 0 : index
    %5 = vector.load %arg4[%c0_4, %c0_5] : memref<128x256xf32, #tpu.memory_space<vmem>>, vector<128x256xf32>
    %cst = arith.constant dense<0.000000e+00> : vector<16x256xf32>
    %6 = tpu.matmul %4, %5, %cst {dimension_numbers = #tpu.dot_dimension_numbers<[1], [0], [0], [1], [0, 0, 1, 1], [], []>} : vector<16x128xf32>, vector<128x256xf32>, vector<16x256xf32> -> vector<16x256xf32>
    %7 = arith.addf %3, %6 : vector<16x256xf32>
    %c0_6 = arith.constant 0 : index
    %c0_7 = arith.constant 0 : index
    %8 = vector.load %arg7[%c0_6, %c0_7] : memref<16x256xf32, #tpu.memory_space<vmem>>, vector<16x256xf32>
    tpu.vector_store %arg7[%c0_6, %c0_7], %7 {strides = array<i32>} : memref<16x256xf32, #tpu.memory_space<vmem>>, vector<16x256xf32>,
    %c0_i32_8 = arith.constant 0 : i32
    %9 = arith.cmpi eq, %arg2, %c0_i32_8 : i32
    %10 = arith.extui %9 : i1 to i32
    %c0_i32_9 = arith.constant 0 : i32
    %11 = arith.cmpi ne, %10, %c0_i32_9 : i32
    scf.if %11 {
      %c0_10 = arith.constant 0 : index
      %c0_11 = arith.constant 0 : index
      %12 = vector.load %arg7[%c0_10, %c0_11] : memref<16x256xf32, #tpu.memory_space<vmem>>, vector<16x256xf32>
      %c0_12 = arith.constant 0 : index
      %c0_13 = arith.constant 0 : index
      %13 = vector.load %arg5[%c0_12, %c0_13] : memref<1x256xf32, #tpu.memory_space<vmem>>, vector<1x256xf32>
      %14 = vector.broadcast %13 : vector<1x256xf32> to vector<16x256xf32>
      %15 = arith.addf %12, %14 : vector<16x256xf32>
      %c0_14 = arith.constant 0 : index
      %c0_15 = arith.constant 0 : index
      %16 = vector.load %arg6[%c0_14, %c0_15] : memref<16x256xf32, #tpu.memory_space<vmem>>, vector<16x256xf32>
      tpu.vector_store %arg6[%c0_14, %c0_15], %15 {strides = array<i32>} : memref<16x256xf32, #tpu.memory_space<vmem>>, vector<16x256xf32>,
    } else {
    }
    return
  }
  func.func @transform_0(%arg0: i32, %arg1: i32, %arg2: i32) -> (i32, i32) {
    %c0_i32 = arith.constant 0 : i32
    return %arg0, %arg2 : i32, i32
  }
  func.func @transform_1(%arg0: i32, %arg1: i32, %arg2: i32) -> (i32, i32) {
    %c0_i32 = arith.constant 0 : i32
    return %arg2, %arg1 : i32, i32
  }
  func.func @transform_2(%arg0: i32, %arg1: i32, %arg2: i32) -> (i32, i32) {
    %c0_i32 = arith.constant 0 : i32
    %c0_i32_0 = arith.constant 0 : i32
    return %c0_i32, %arg1 : i32, i32
  }
  func.func @transform_3(%arg0: i32, %arg1: i32, %arg2: i32) -> (i32, i32) {
    %c0_i32 = arith.constant 0 : i32
    return %arg0, %arg1 : i32, i32
  }
}

</mosaic_0001>

<llo_original>
// kernel: fast_linear.1
$region0: #{fast_linear.1}
  #allocation0 [shape = 'u32[]', space=smem, size = 0x4, offset = 0x4, fixed_abs, tag = 'smem constant byte address 0x4 - core index']
  #allocation1 [shape = 'u32[144,128]{1,0:T(1,128)}', space=vmem, size = 0x12000, scoped, tag = 'internal scratch']
  #allocation2 [shape = 'f32[16,256]{1,0:T(8,128)}', space=vmem, size = 0x4000, scoped, tag = 'scratch operand']
  %s0 = inlined_call_operand.vmem [shape: f32[16,128], index: 0, kind: input, shape index: {}]
  %s1 = inlined_call_operand.vmem [shape: f32[128,256], index: 1, kind: input, shape index: {}]
  %s2 = inlined_call_operand.vmem [shape: f32[1,256], index: 2, kind: input, shape index: {}]
  %s3 = inlined_call_operand.hbm [shape: f32[16,256], index: 3, kind: output, shape index: {}]
  %s4 = sld [smem:[#allocation0]]
  $region30: #{fast_linear.1} parent=0
    _
  %s6 = ssub.s32 1, %s4
  %s7 = scalar_select 0, %s6, %s4
  $region1: #{fast_linear.1} parent=0
    #allocation3 [shape = 'u8[16384]{0}', space=vmem, size = 0x4000, scoped, tag = 'output window, operand 0, single buffered']
    #allocation4 [shape = 's32[1]{0}', space=sflag, size = 0x4, scoped, tag = 'scoped memory for fast_linear.1']
    %8 = vsyncpa [#allocation4], 0
    // Predicated region
    $region2: #{fast_linear.1} parent=1 // pred_check
      _
    $region3: #{fast_linear.1} parent=1 // pred_check_branch
      %10 = sbr.rel (0) target = $region5
    $region4: #{fast_linear.1} parent=1 // pred_region
      _
    $region5: #{fast_linear.1} parent=1 // pred_fallthru
      _
    // Predicated region
    $region6: #{fast_linear.1} parent=1 // pred_check
      _
    $region7: #{fast_linear.1} parent=1 // pred_check_branch
      %12 = sbr.rel (0) target = $region9
    $region8: #{fast_linear.1} parent=1 // pred_region
      _
    $region9: #{fast_linear.1} parent=1 // pred_fallthru
      _
    // Predicated region
    $region10: #{fast_linear.1} parent=1 // pred_check
      _
    $region11: #{fast_linear.1} parent=1 // pred_check_branch
      %14 = sbr.rel (0) target = $region13
    $region12: #{fast_linear.1} parent=1 // pred_region
      _
    $region13: #{fast_linear.1} parent=1 // pred_fallthru
      _
    %p15 = scmp.eq.s32.totalorder 0, 0
    // Predicated region
    $region14: #{fast_linear.1} parent=1 // pred_check
      %p16 = pneg %p15
    $region15: #{fast_linear.1} parent=1 // pred_check_branch
      %18 = sbr.rel (%p16) target = $region17
    $region16: #{fast_linear.1} parent=1 // pred_region
      %19 = vst [vmem:[#allocation2] sm:$0xff] 0.0
      %20 = vst [vmem:[#allocation2 + $0x8] sm:$0xff] 0.0
      %21 = vst [vmem:[#allocation2 + $0x10] sm:$0xff] 0.0
      %22 = vst [vmem:[#allocation2 + $0x18] sm:$0xff] 0.0
    $region17: #{fast_linear.1} parent=1 // pred_fallthru
      _
    %v23 = vld [vmem:[#allocation2] sm:$0xff]
    %v24 = vld [vmem:[#allocation2 + $0x8] sm:$0xff]
    %v25 = vld [vmem:[#allocation2 + $0x10] sm:$0xff]
    %v26 = vld [vmem:[#allocation2 + $0x18] sm:$0xff]
    %v27 = vld [vmem:[%s0] sm:$0xff]
    %v28 = vld [vmem:[%s0 + $0x8] sm:$0xff]
    %v29 = vld [vmem:[%s1] sm:$0xff]
    %v30 = vld [vmem:[%s1 + $0x8] sm:$0xff]
    %v31 = vld [vmem:[%s1 + $0x10] sm:$0xff]
    %v32 = vld [vmem:[%s1 + $0x18] sm:$0xff]
    %v33 = vld [vmem:[%s1 + $0x20] sm:$0xff]
    %v34 = vld [vmem:[%s1 + $0x28] sm:$0xff]
    %v35 = vld [vmem:[%s1 + $0x30] sm:$0xff]
    %v36 = vld [vmem:[%s1 + $0x38] sm:$0xff]
    %v37 = vld [vmem:[%s1 + $0x40] sm:$0xff]
    %v38 = vld [vmem:[%s1 + $0x48] sm:$0xff]
    %v39 = vld [vmem:[%s1 + $0x50] sm:$0xff]
    %v40 = vld [vmem:[%s1 + $0x58] sm:$0xff]
    %v41 = vld [vmem:[%s1 + $0x60] sm:$0xff]
    %v42 = vld [vmem:[%s1 + $0x68] sm:$0xff]
    %v43 = vld [vmem:[%s1 + $0x70] sm:$0xff]
    %v44 = vld [vmem:[%s1 + $0x78] sm:$0xff]
    %v45 = vld [vmem:[%s1 + $0x80] sm:$0xff]
    %v46 = vld [vmem:[%s1 + $0x88] sm:$0xff]
    %v47 = vld [vmem:[%s1 + $0x90] sm:$0xff]
    %v48 = vld [vmem:[%s1 + $0x98] sm:$0xff]
    %v49 = vld [vmem:[%s1 + $0xa0] sm:$0xff]
    %v50 = vld [vmem:[%s1 + $0xa8] sm:$0xff]
    %v51 = vld [vmem:[%s1 + $0xb0] sm:$0xff]
    %v52 = vld [vmem:[%s1 + $0xb8] sm:$0xff]
    %v53 = vld [vmem:[%s1 + $0xc0] sm:$0xff]
    %v54 = vld [vmem:[%s1 + $0xc8] sm:$0xff]
    %v55 = vld [vmem:[%s1 + $0xd0] sm:$0xff]
    %v56 = vld [vmem:[%s1 + $0xd8] sm:$0xff]
    %v57 = vld [vmem:[%s1 + $0xe0] sm:$0xff]
    %v58 = vld [vmem:[%s1 + $0xe8] sm:$0xff]
    %v59 = vld [vmem:[%s1 + $0xf0] sm:$0xff]
    %v60 = vld [vmem:[%s1 + $0xf8] sm:$0xff]
    %61 = vmatprep.subr.mxu0 %v60
    %62 = vmatpush1.msra.mxu0 %v59
    %63 = vmatprep.subr.mxu0 %v58
    %64 = vmatpush1.msra.mxu0 %v57
    %65 = vmatprep.subr.mxu0 %v56
    %66 = vmatpush1.msra.mxu0 %v55
    %67 = vmatprep.subr.mxu0 %v54
    %68 = vmatpush1.msra.mxu0 %v53
    %69 = vmatprep.subr.mxu0 %v52
    %70 = vmatpush1.msra.mxu0 %v51
    %71 = vmatprep.subr.mxu0 %v50
    %72 = vmatpush1.msra.mxu0 %v49
    %73 = vmatprep.subr.mxu0 %v48
    %74 = vmatpush1.msra.mxu0 %v47
    %75 = vmatprep.subr.mxu0 %v46
    %76 = vmatpush1.msra.mxu0 %v45
    %77 = vmatprep.subr.mxu0 %v44
    %78 = vmatpush1.msra.mxu0 %v43
    %79 = vmatprep.subr.mxu0 %v42
    %80 = vmatpush1.msra.mxu0 %v41
    %81 = vmatprep.subr.mxu0 %v40
    %82 = vmatpush1.msra.mxu0 %v39
    %83 = vmatprep.subr.mxu0 %v38
    %84 = vmatpush1.msra.mxu0 %v37
    %85 = vmatprep.subr.mxu0 %v36
    %86 = vmatpush1.msra.mxu0 %v35
    %87 = vmatprep.subr.mxu0 %v34
    %88 = vmatpush1.msra.mxu0 %v33
    %89 = vmatprep.subr.mxu0 %v32
    %90 = vmatpush1.msra.mxu0 %v31
    %91 = vmatprep.subr.mxu0 %v30
    %92 = vmatpush1.msra.mxu0 %v29
    %93 = vmatprep.subr.mxu0 0.0
    %94 = vmatpush2.msra.mxu0 0.0
    %95 = vmatprep.subr.mxu0 0.0
    %96 = vmatpush2.msra.mxu0 0.0
    %97 = vmatprep.subr.mxu0 0.0
    %98 = vmatpush2.msra.mxu0 0.0
    %99 = vmatprep.subr.mxu0 0.0
    %100 = vmatpush2.msra.mxu0 0.0
    %101 = vmatprep.subr.mxu0 0.0
    %102 = vmatpush2.msra.mxu0 0.0
    %103 = vmatprep.subr.mxu0 0.0
    %104 = vmatpush2.msra.mxu0 0.0
    %105 = vmatprep.subr.mxu0 0.0
    %106 = vmatpush2.msra.mxu0 0.0
    %107 = vmatprep.subr.mxu0 0.0
    %108 = vmatpush2.msra.mxu0 0.0
    %109 = vmatprep.subr.mxu0 0.0
    %110 = vmatpush2.msra.mxu0 0.0
    %111 = vmatprep.subr.mxu0 0.0
    %112 = vmatpush2.msra.mxu0 0.0
    %113 = vmatprep.subr.mxu0 0.0
    %114 = vmatpush2.msra.mxu0 0.0
    %115 = vmatprep.subr.mxu0 0.0
    %116 = vmatpush2.msra.mxu0 0.0
    %117 = vmatprep.subr.mxu0 0.0
    %118 = vmatpush2.msra.mxu0 0.0
    %119 = vmatprep.subr.mxu0 0.0
    %120 = vmatpush2.msra.mxu0 0.0
    %121 = vmatprep.subr.mxu0 0.0
    %122 = vmatpush2.msra.mxu0 0.0
    %123 = vmatprep.subr.mxu0 0.0
    %124 = vmatpush2.msra.mxu0 0.0
    %125 = vmatprep.mubr.f32.mxu0 0.0
    %126 = vmatmul.mubr.f32.gmra.mxu0 %v27
    %v127 = vpop.f32.mrf.mxu0
    %v128 = vadd.f32 0.0, %v127
    %v129 = vpop.f32.mrf.mxu0
    %v130 = vadd.f32 0.0, %v129
    %131 = vmatprep.mubr.f32.mxu0 0.0
    %132 = vmatmul.mubr.f32.gmra.mxu0 %v28
    %v133 = vpop.f32.mrf.mxu0
    %v134 = vadd.f32 0.0, %v133
    %v135 = vpop.f32.mrf.mxu0
    %v136 = vadd.f32 0.0, %v135
    %137 = vdwg.mxu0
    %v138 = vadd.f32 %v23, %v128
    %v139 = vadd.f32 %v24, %v130
    %v140 = vadd.f32 %v25, %v134
    %v141 = vadd.f32 %v26, %v136
    %142 = vst [vmem:[#allocation2] sm:$0xff] %v138
    %143 = vst [vmem:[#allocation2 + $0x8] sm:$0xff] %v139
    %144 = vst [vmem:[#allocation2 + $0x10] sm:$0xff] %v140
    %145 = vst [vmem:[#allocation2 + $0x18] sm:$0xff] %v141
    // Predicated region
    $region18: #{fast_linear.1} parent=1 // pred_check
      %p146 = pneg %p15
    $region19: #{fast_linear.1} parent=1 // pred_check_branch
      %148 = sbr.rel (%p146) target = $region21
    $region20: #{fast_linear.1} parent=1 // pred_region
      %v149 = vld [vmem:[#allocation2] sm:$0xff]
      %v150 = vld [vmem:[#allocation2 + $0x8] sm:$0xff]
      %v151 = vld [vmem:[#allocation2 + $0x10] sm:$0xff]
      %v152 = vld [vmem:[#allocation2 + $0x18] sm:$0xff]
      %v153 = vld [vmem:[%s2] sm:$0x3]
      %v155 = vlaneseq
      %v156 = vshrl.u32 %v155, 7
      %v157 = vsub.s32 0, %v156
      %v158 = vrot.slane %v153, %v157
      %v159 = vlaneseq
      %v160 = vshrl.u32 %v159, 7
      %v161 = vsub.s32 1, %v160
      %v162 = vrot.slane %v153, %v161
      %v165 = vadd.f32 %v149, %v158
      %v166 = vadd.f32 %v150, %v162
      %v167 = vadd.f32 %v151, %v158
      %v168 = vadd.f32 %v152, %v162
      %169 = vst [vmem:[#allocation3] sm:$0xff] %v165
      %170 = vst [vmem:[#allocation3 + $0x8] sm:$0xff] %v166
      %171 = vst [vmem:[#allocation3 + $0x10] sm:$0xff] %v167
      %172 = vst [vmem:[#allocation3 + $0x18] sm:$0xff] %v168
    $region21: #{fast_linear.1} parent=1 // pred_fallthru
      _
    // Predicated region
    $region22: #{fast_linear.1} parent=1 // pred_check
      _
    $region23: #{fast_linear.1} parent=1 // pred_check_branch
      %174 = sbr.rel (0) target = $region25
    $region24: #{fast_linear.1} parent=1 // pred_region
      %s176 = ssub.s32 512, 512
      %177 = vsyncadd [#allocation4], %s176
      %s178 = sshll.u32 [#allocation3], 4
      %s179 = int_to_ptr.vmem [resolvable:$true] %s178
      %184 = dma.vmem_to_hbm [thread:$0]  %s179, 512, %s3, [#allocation4], 256, 256, 16
    $region25: #{fast_linear.1} parent=1 // pred_fallthru
      _
    // Predicated region
    $region26: #{fast_linear.1} parent=1 // pred_check
      _
    $region27: #{fast_linear.1} parent=1 // pred_check_branch
      %186 = sbr.rel (0) target = $region29
    $region28: #{fast_linear.1} parent=1 // pred_region
      %187 = dma.done [#allocation4], 512
    $region29: #{fast_linear.1} parent=1 // pred_fallthru
      _
    %188 = vsyncpa [#allocation4], 1

</llo_original>
